<compile_context>
chip_gen: v7x
topology: tpu7x:2x2x1
jax: 0.10.0
libtpu: 0.0.40
codegen_flags: <defaults>
</compile_context>

<pallas_src>
import jax
import jax.numpy as jnp
from jax.experimental import pallas as pl
from jax.experimental.pallas import tpu as pltpu

# ---------------- configuration (small shapes consistent with the module) -----------
DIC_SIZE = 50
EMB_DIM_TEXT = 16          # use_glove = 0
HIDDEN_TEXT = 16
D_TEXT = 2 * HIDDEN_TEXT   # bidirectional -> 32

INPUT_SIZE_AUDIO = 12
PROSODY = 4
HIDDEN_AUDIO = 16
D_AUDIO = 2 * HIDDEN_AUDIO  # 32 (must equal D_TEXT for the final `out` layer)

OUTPUT_DIM = 8
B = 2
L = 8                       # L_TEXT == L_AUDIO (stacking assumption for the fused attn)
D = D_TEXT
LANES = 128

assert D_TEXT == D_AUDIO, "final `out` layer requires equal text/audio attn dims"

# ---------------- packed weight-slab row layout (all offsets multiples of 8) ---------
ROW_TEXTW = 0                              # (DIC_SIZE, D)          folded embed @ proj
ROW_AUDIOW = 56                            # (INPUT_SIZE_AUDIO, D)
ROW_FC = 72                                # (128, 2D)   block-diag fc_audio / fc_text
ROW_ATT_IN = ROW_FC + LANES                # 200: (2D, D) stacked linear_in
ROW_ATT_OUT = ROW_ATT_IN + 2 * D           # 264: (128, D) stacked linear_out
ROW_OUT = ROW_ATT_OUT + LANES              # 392: (128, OUTPUT_DIM) final projection
ROW_B_FC = ROW_OUT + LANES                 # 520: (1, 2D)  [b_fc_audio | b_fc_text]
ROW_B_OUT = ROW_B_FC + 8                   # 528: (1, OUTPUT_DIM)
SLAB_ROWS = ROW_B_OUT + 8                  # 536


# ================================ fused Pallas kernel ================================

def _fused_forward_kernel(seq_text_ref, seq_audio_ref, prosody_ref, wslab_ref, o_ref,
                          s_ctx, s_fc, s_q, s_lo, s_fin):
    f32 = jnp.float32
    prosody = prosody_ref[...]                                          # (B, P)

    # -------- encoder stand-ins, written stacked into s_ctx -------------------------
    # rows [0, B*L)     : text contexts  (queried by audio -> attn_text)
    # rows [B*L, 2*B*L) : audio contexts (queried by text  -> attn_audio)
    seq = seq_text_ref[...]                                             # (B, L) int32
    ids = jax.lax.broadcasted_iota(jnp.int32, (B, L, DIC_SIZE), 2)
    onehot = (seq[:, :, None] == ids).astype(f32).reshape(B * L, DIC_SIZE)
    w_txt = wslab_ref[ROW_TEXTW:ROW_TEXTW + DIC_SIZE, 0:D]              # (50, 32)
    s_ctx[0:B * L, :] = jnp.tanh(
        jnp.dot(onehot, w_txt, preferred_element_type=f32))

    aud = seq_audio_ref[...].reshape(B * L, INPUT_SIZE_AUDIO)           # (16, 12)
    w_aud = wslab_ref[ROW_AUDIOW:ROW_AUDIOW + INPUT_SIZE_AUDIO, 0:D]    # (12, 32)
    s_ctx[B * L:2 * B * L, :] = jnp.tanh(
        jnp.dot(aud, w_aud, preferred_element_type=f32))

    ctx = s_ctx[...].reshape(2 * B, L, D)     # [0,B): text ctx, [B,2B): audio ctx
    last = ctx[:, L - 1, :]                   # (2B, D) last-step pooling

    # -------- fc_audio + fc_text as one block-diagonal matmul -----------------------
    # input lanes: [audio_hidden(0:32) | prosody(32:36) | text_hidden(36:68) | 0...]
    s_fc[...] = jnp.zeros_like(s_fc)
    s_fc[:, 0:D] = last[B:2 * B, :]                       # audio_encoded_raw (hidden)
    s_fc[:, D:D + PROSODY] = prosody                      # audio_encoded_raw (prosody)
    s_fc[:, D + PROSODY:2 * D + PROSODY] = last[0:B, :]   # text_encoded_raw
    w_fc = wslab_ref[ROW_FC:ROW_FC + LANES, 0:2 * D]      # (128, 64)
    b_fc = wslab_ref[ROW_B_FC:ROW_B_FC + 1, 0:2 * D]      # (1, 64)
    fc = jnp.dot(s_fc[...], w_fc, preferred_element_type=f32) + b_fc    # (B, 64)
    # fc[:, 0:D]  = fc_audio(audio_encoded_raw)  -> query of attn_text
    # fc[:, D:2D] = fc_text(text_encoded_raw)    -> query of attn_audio

    # -------- both Attn.linear_in, stacked (one matmul) -----------------------------
    s_q[...] = jnp.zeros_like(s_q)
    s_q[0:B, 0:D] = fc[:, 0:D]
    s_q[B:2 * B, D:2 * D] = fc[:, D:2 * D]
    w_in = wslab_ref[ROW_ATT_IN:ROW_ATT_IN + 2 * D, 0:D]                # (64, 32)
    q2 = jnp.dot(s_q[...], w_in, preferred_element_type=f32)            # (2B, D)

    # -------- scores / softmax / mix on VPU+XLU (q_len == 1, no tiny MXU bmm's) -----
    scores = jnp.sum(q2[:, None, :] * ctx, axis=-1)                     # (2B, L)
    m = jnp.max(scores, axis=-1, keepdims=True)
    e = jnp.exp(scores - m)
    attw = e / jnp.sum(e, axis=-1, keepdims=True)                       # exact softmax
    att = jnp.sum(attw[:, :, None] * ctx, axis=1)                       # (2B, D)

    # -------- both Attn.linear_out(cat(attened, projected_query)), stacked ----------
    s_lo[...] = jnp.zeros_like(s_lo)
    s_lo[0:B, 0:D] = att[0:B, :]
    s_lo[0:B, D:2 * D] = q2[0:B, :]
    s_lo[B:2 * B, 2 * D:3 * D] = att[B:2 * B, :]
    s_lo[B:2 * B, 3 * D:4 * D] = q2[B:2 * B, :]
    w_lo = wslab_ref[ROW_ATT_OUT:ROW_ATT_OUT + LANES, 0:D]              # (128, 32)
    lo = jnp.dot(s_lo[...], w_lo, preferred_element_type=f32)           # (2B, D)
    # lo[0:B] = attn_text_encoded, lo[B:2B] = attn_audio_encoded

    # -------- out(cat(attn_text, attn_audio, prosody)) as one matmul ----------------
    s_fin[...] = jnp.zeros_like(s_fin)
    s_fin[:, 0:D] = lo[0:B, :]
    s_fin[:, D:2 * D] = lo[B:2 * B, :]
    s_fin[:, 2 * D:2 * D + PROSODY] = prosody
    w_out = wslab_ref[ROW_OUT:ROW_OUT + LANES, 0:OUTPUT_DIM]            # (128, 8)
    b_out = wslab_ref[ROW_B_OUT:ROW_B_OUT + 1, 0:OUTPUT_DIM]            # (1, 8)
    o_ref[...] = jnp.dot(s_fin[...], w_out, preferred_element_type=f32) + b_out


@jax.jit
def multi_modal_attn_forward(wslab, input_seq_text, input_lengths_text,
                             input_seq_audio, input_lengths_audio, input_prosody):
    # TODO(synk): packed-sequence lengths are not modeled by the stand-in encoders,
    # so input_lengths_* are unused and the attention softmax is not length-masked.
    del input_lengths_text, input_lengths_audio
    vmem = pl.BlockSpec(memory_space=pltpu.MemorySpace.VMEM)
    return pl.pallas_call(
        _fused_forward_kernel,
        out_shape=jax.ShapeDtypeStruct((B, OUTPUT_DIM), jnp.float32),
        in_specs=[vmem, vmem, vmem, vmem],
        out_specs=vmem,
        scratch_shapes=[
            pltpu.VMEM((2 * B * L, D), jnp.float32),   # stacked text/audio contexts
            pltpu.VMEM((B, LANES), jnp.float32),       # block-diag fc input
            pltpu.VMEM((2 * B, 2 * D), jnp.float32),   # stacked linear_in input
            pltpu.VMEM((2 * B, LANES), jnp.float32),   # stacked linear_out input
            pltpu.VMEM((B, LANES), jnp.float32),       # final out input
        ],
    )(input_seq_text, input_seq_audio, input_prosody, wslab)


# ================================ parameters ========================================

def make_params(key):
    ks = jax.random.split(key, 10)
    u = lambda k, shape, lo=-0.25, hi=0.25: jax.random.uniform(
        k, shape, jnp.float32, lo, hi)

    raw = dict(
        # encoder stand-ins (TODO(synk): real packed-sequence RNN encoders unspecified)
        emb_table=u(ks[0], (DIC_SIZE, EMB_DIM_TEXT), -0.1, 0.1),
        w_enc_text=u(ks[1], (EMB_DIM_TEXT, D_TEXT)),
        w_enc_audio=u(ks[2], (INPUT_SIZE_AUDIO, D_AUDIO)),
        # module weights in torch (out_features, in_features) orientation
        fc_audio_w=u(ks[3], (D_TEXT, D_AUDIO + PROSODY)),
        fc_text_w=u(ks[4], (D_AUDIO, D_TEXT)),
        attn_text_w_in=u(ks[5], (D_TEXT, D_TEXT)),
        attn_text_w_out=u(ks[6], (D_TEXT, 2 * D_TEXT)),
        attn_audio_w_in=u(ks[7], (D_AUDIO, D_AUDIO)),
        attn_audio_w_out=u(ks[8], (D_AUDIO, 2 * D_AUDIO)),
        out_w=u(ks[9], (OUTPUT_DIM, 2 * D_TEXT + PROSODY)),
        # biases are zero-initialised in the module
        fc_audio_b=jnp.zeros((D_TEXT,), jnp.float32),
        fc_text_b=jnp.zeros((D_AUDIO,), jnp.float32),
        out_b=jnp.zeros((OUTPUT_DIM,), jnp.float32),
    )

    # ---- pack everything into one lane-padded f32 slab (single DMA at kernel time) -
    slab = jnp.zeros((SLAB_ROWS, LANES), jnp.float32)
    # text encoder stand-in: embedding lookup folded with the projection (exact)
    slab = slab.at[ROW_TEXTW:ROW_TEXTW + DIC_SIZE, 0:D].set(
        raw["emb_table"] @ raw["w_enc_text"])
    slab = slab.at[ROW_AUDIOW:ROW_AUDIOW + INPUT_SIZE_AUDIO, 0:D].set(raw["w_enc_audio"])
    # block-diagonal fc: input lanes [audio_hidden(32) | prosody(4) | text_hidden(32)]
    slab = slab.at[ROW_FC:ROW_FC + D + PROSODY, 0:D].set(raw["fc_audio_w"].T)
    slab = slab.at[ROW_FC + D + PROSODY:ROW_FC + 2 * D + PROSODY, D:2 * D].set(
        raw["fc_text_w"].T)
    slab = slab.at[ROW_B_FC, 0:D].set(raw["fc_audio_b"])
    slab = slab.at[ROW_B_FC, D:2 * D].set(raw["fc_text_b"])
    # stacked linear_in: rows [0,32) attn_text, [32,64) attn_audio
    slab = slab.at[ROW_ATT_IN:ROW_ATT_IN + D, 0:D].set(raw["attn_text_w_in"].T)
    slab = slab.at[ROW_ATT_IN + D:ROW_ATT_IN + 2 * D, 0:D].set(raw["attn_audio_w_in"].T)
    # stacked linear_out: rows [0,64) attn_text (att|q2 halves), [64,128) attn_audio
    slab = slab.at[ROW_ATT_OUT:ROW_ATT_OUT + 2 * D, 0:D].set(raw["attn_text_w_out"].T)
    slab = slab.at[ROW_ATT_OUT + 2 * D:ROW_ATT_OUT + 4 * D, 0:D].set(
        raw["attn_audio_w_out"].T)
    # final projection, input lanes [attn_text(32) | attn_audio(32) | prosody(4)]
    slab = slab.at[ROW_OUT:ROW_OUT + 2 * D + PROSODY, 0:OUTPUT_DIM].set(raw["out_w"].T)
    slab = slab.at[ROW_B_OUT, 0:OUTPUT_DIM].set(raw["out_b"])

    return {"wslab": slab, "raw": raw}


# ============================ pure-JAX reference (parity) ===========================

def reference_forward(raw, seq_text, seq_audio, prosody):
    emb = raw["emb_table"][seq_text]                              # (B, L, E)
    ctx_text = jnp.tanh(emb @ raw["w_enc_text"])                  # (B, L, D)
    ctx_audio = jnp.tanh(seq_audio @ raw["w_enc_audio"])          # (B, L, D)
    text_encoded = ctx_text[:, -1, :]
    audio_encoded = jnp.concatenate([ctx_audio[:, -1, :], prosody], axis=1)
    audio_q = audio_encoded @ raw["fc_audio_w"].T + raw["fc_audio_b"]
    text_q = text_encoded @ raw["fc_text_w"].T + raw["fc_text_b"]

    def attn(q, ctx, w_in, w_out):                                # Attn.forward, len 1
        q2 = q @ w_in.T
        s = jnp.einsum("bd,bld->bl", q2, ctx)
        w = jax.nn.softmax(s, axis=-1)
        mix = jnp.einsum("bl,bld->bd", w, ctx)
        return jnp.concatenate([mix, q2], axis=1) @ w_out.T

    attn_text = attn(audio_q, ctx_text, raw["attn_text_w_in"], raw["attn_text_w_out"])
    attn_audio = attn(text_q, ctx_audio, raw["attn_audio_w_in"], raw["attn_audio_w_out"])
    fin = jnp.concatenate([attn_text, attn_audio, prosody], axis=1)
    return fin @ raw["out_w"].T + raw["out_b"]


# ===================================== main =========================================

if __name__ == "__main__":
    key = jax.random.PRNGKey(0)
    k_par, k_txt, k_aud, k_pro = jax.random.split(key, 4)

    params = make_params(k_par)

    input_seq_text = jax.random.randint(k_txt, (B, L), 0, DIC_SIZE, jnp.int32)
    input_lengths_text = jnp.full((B,), L, jnp.int32)
    input_seq_audio = jax.random.normal(k_aud, (B, L, INPUT_SIZE_AUDIO), jnp.float32)
    input_lengths_audio = jnp.full((B,), L, jnp.int32)
    input_prosody = jax.random.normal(k_pro, (B, PROSODY), jnp.float32)

    out = multi_modal_attn_forward(
        params["wslab"], input_seq_text, input_lengths_text,
        input_seq_audio, input_lengths_audio, input_prosody)
    out = jax.block_until_ready(out)
    assert out.shape == (B, OUTPUT_DIM), out.shape

    ref = reference_forward(params["raw"], input_seq_text, input_seq_audio, input_prosody)
    assert bool(jnp.allclose(out, ref, rtol=5e-4, atol=1e-4)), (out, ref)
    print("KERNEL_OK")
</pallas_src>

<mosaic_0001>
module attributes {stable_mosaic.version = 11 : i64} {
  func.func @_fused_forward_kernel(%arg0: memref<2x8xi32, #tpu.memory_space<vmem>>, %arg1: memref<2x8x12xf32, #tpu.memory_space<vmem>>, %arg2: memref<2x4xf32, #tpu.memory_space<vmem>>, %arg3: memref<536x128xf32, #tpu.memory_space<vmem>>, %arg4: memref<2x8xf32, #tpu.memory_space<vmem>>, %arg5: memref<32x32xf32, #tpu.memory_space<vmem>>, %arg6: memref<2x128xf32, #tpu.memory_space<vmem>>, %arg7: memref<4x64xf32, #tpu.memory_space<vmem>>, %arg8: memref<4x128xf32, #tpu.memory_space<vmem>>, %arg9: memref<2x128xf32, #tpu.memory_space<vmem>>) attributes {dimension_semantics = [], scalar_prefetch = 0 : i64, scratch_operands = 5 : i64, tpu.core_type = #tpu.core_type<tc>} {
    %c0 = arith.constant 0 : index
    %c0_0 = arith.constant 0 : index
    %0 = vector.load %arg2[%c0, %c0_0] : memref<2x4xf32, #tpu.memory_space<vmem>>, vector<2x4xf32>
    %c0_1 = arith.constant 0 : index
    %c0_2 = arith.constant 0 : index
    %1 = vector.load %arg0[%c0_1, %c0_2] : memref<2x8xi32, #tpu.memory_space<vmem>>, vector<2x8xi32>
    %2 = tpu.iota {dimensions = array<i32: 2>} : vector<2x8x50xi32>
    %3 = vector.shape_cast %1 : vector<2x8xi32> to vector<2x8x1xi32>
    %4 = vector.broadcast %3 : vector<2x8x1xi32> to vector<2x8x50xi32>
    %5 = arith.cmpi eq, %4, %2 : vector<2x8x50xi32>
    %6 = arith.extui %5 : vector<2x8x50xi1> to vector<2x8x50xi32>
    %7 = arith.sitofp %6 : vector<2x8x50xi32> to vector<2x8x50xf32>
    %8 = vector.shape_cast %7 : vector<2x8x50xf32> to vector<16x50xf32>
    %c0_3 = arith.constant 0 : index
    %c0_4 = arith.constant 0 : index
    %9 = vector.load %arg3[%c0_3, %c0_4] : memref<536x128xf32, #tpu.memory_space<vmem>>, vector<50x32xf32>
    %cst = arith.constant dense<0.000000e+00> : vector<16x32xf32>
    %10 = tpu.matmul %8, %9, %cst {dimension_numbers = #tpu.dot_dimension_numbers<[1], [0], [0], [1], [0, 0, 1, 1], [], []>} : vector<16x50xf32>, vector<50x32xf32>, vector<16x32xf32> -> vector<16x32xf32>
    %11 = math.tanh %10 : vector<16x32xf32>
    %c0_5 = arith.constant 0 : index
    %c0_6 = arith.constant 0 : index
    %12 = vector.load %arg5[%c0_5, %c0_6] : memref<32x32xf32, #tpu.memory_space<vmem>>, vector<16x32xf32>
    tpu.vector_store %arg5[%c0_5, %c0_6], %11 {strides = array<i32>} : memref<32x32xf32, #tpu.memory_space<vmem>>, vector<16x32xf32>,
    %c0_7 = arith.constant 0 : index
    %c0_8 = arith.constant 0 : index
    %c0_9 = arith.constant 0 : index
    %13 = vector.load %arg1[%c0_7, %c0_8, %c0_9] : memref<2x8x12xf32, #tpu.memory_space<vmem>>, vector<2x8x12xf32>
    %14 = vector.shape_cast %13 : vector<2x8x12xf32> to vector<16x12xf32>
    %c56 = arith.constant 56 : index
    %c0_10 = arith.constant 0 : index
    %15 = vector.load %arg3[%c56, %c0_10] : memref<536x128xf32, #tpu.memory_space<vmem>>, vector<12x32xf32>
    %cst_11 = arith.constant dense<0.000000e+00> : vector<16x32xf32>
    %16 = tpu.matmul %14, %15, %cst_11 {dimension_numbers = #tpu.dot_dimension_numbers<[1], [0], [0], [1], [0, 0, 1, 1], [], []>} : vector<16x12xf32>, vector<12x32xf32>, vector<16x32xf32> -> vector<16x32xf32>
    %17 = math.tanh %16 : vector<16x32xf32>
    %c16 = arith.constant 16 : index
    %c0_12 = arith.constant 0 : index
    %18 = vector.load %arg5[%c16, %c0_12] : memref<32x32xf32, #tpu.memory_space<vmem>>, vector<16x32xf32>
    tpu.vector_store %arg5[%c16, %c0_12], %17 {strides = array<i32>} : memref<32x32xf32, #tpu.memory_space<vmem>>, vector<16x32xf32>,
    %c0_13 = arith.constant 0 : index
    %c0_14 = arith.constant 0 : index
    %19 = vector.load %arg5[%c0_13, %c0_14] : memref<32x32xf32, #tpu.memory_space<vmem>>, vector<32x32xf32>
    %20 = vector.shape_cast %19 : vector<32x32xf32> to vector<4x8x32xf32>
    %21 = vector.extract_strided_slice %20 {offsets = [0, 7, 0], sizes = [4, 1, 32], strides = [1, 1, 1]} : vector<4x8x32xf32> to vector<4x1x32xf32>
    %22 = vector.shape_cast %21 : vector<4x1x32xf32> to vector<4x32xf32>
    %cst_15 = arith.constant 0.000000e+00 : f32
    %23 = vector.broadcast %cst_15 : f32 to vector<2x128xf32>
    %c0_16 = arith.constant 0 : index
    %c0_17 = arith.constant 0 : index
    %24 = vector.load %arg6[%c0_16, %c0_17] : memref<2x128xf32, #tpu.memory_space<vmem>>, vector<2x128xf32>
    tpu.vector_store %arg6[%c0_16, %c0_17], %23 {strides = array<i32>} : memref<2x128xf32, #tpu.memory_space<vmem>>, vector<2x128xf32>,
    %25 = vector.extract_strided_slice %22 {offsets = [2, 0], sizes = [2, 32], strides = [1, 1]} : vector<4x32xf32> to vector<2x32xf32>
    %c0_18 = arith.constant 0 : index
    %c0_19 = arith.constant 0 : index
    %26 = vector.load %arg6[%c0_18, %c0_19] : memref<2x128xf32, #tpu.memory_space<vmem>>, vector<2x32xf32>
    tpu.vector_store %arg6[%c0_18, %c0_19], %25 {strides = array<i32>} : memref<2x128xf32, #tpu.memory_space<vmem>>, vector<2x32xf32>,
    %c0_20 = arith.constant 0 : index
    %c32 = arith.constant 32 : index
    %27 = vector.load %arg6[%c0_20, %c32] : memref<2x128xf32, #tpu.memory_space<vmem>>, vector<2x4xf32>
    tpu.vector_store %arg6[%c0_20, %c32], %0 {strides = array<i32>} : memref<2x128xf32, #tpu.memory_space<vmem>>, vector<2x4xf32>,
    %28 = vector.extract_strided_slice %22 {offsets = [0, 0], sizes = [2, 32], strides = [1, 1]} : vector<4x32xf32> to vector<2x32xf32>
    %c0_21 = arith.constant 0 : index
    %c36 = arith.constant 36 : index
    %29 = vector.load %arg6[%c0_21, %c36] : memref<2x128xf32, #tpu.memory_space<vmem>>, vector<2x32xf32>
    tpu.vector_store %arg6[%c0_21, %c36], %28 {strides = array<i32>} : memref<2x128xf32, #tpu.memory_space<vmem>>, vector<2x32xf32>,
    %c72 = arith.constant 72 : index
    %c0_22 = arith.constant 0 : index
    %30 = vector.load %arg3[%c72, %c0_22] : memref<536x128xf32, #tpu.memory_space<vmem>>, vector<128x64xf32>
    %c520 = arith.constant 520 : index
    %c0_23 = arith.constant 0 : index
    %31 = vector.load %arg3[%c520, %c0_23] : memref<536x128xf32, #tpu.memory_space<vmem>>, vector<1x64xf32>
    %c0_24 = arith.constant 0 : index
    %c0_25 = arith.constant 0 : index
    %32 = vector.load %arg6[%c0_24, %c0_25] : memref<2x128xf32, #tpu.memory_space<vmem>>, vector<2x128xf32>
    %cst_26 = arith.constant dense<0.000000e+00> : vector<2x64xf32>
    %33 = tpu.matmul %32, %30, %cst_26 {dimension_numbers = #tpu.dot_dimension_numbers<[1], [0], [0], [1], [0, 0, 1, 1], [], []>} : vector<2x128xf32>, vector<128x64xf32>, vector<2x64xf32> -> vector<2x64xf32>
    %34 = vector.broadcast %31 : vector<1x64xf32> to vector<2x64xf32>
    %35 = arith.addf %33, %34 : vector<2x64xf32>
    %cst_27 = arith.constant 0.000000e+00 : f32
    %36 = vector.broadcast %cst_27 : f32 to vector<4x64xf32>
    %c0_28 = arith.constant 0 : index
    %c0_29 = arith.constant 0 : index
    %37 = vector.load %arg7[%c0_28, %c0_29] : memref<4x64xf32, #tpu.memory_space<vmem>>, vector<4x64xf32>
    tpu.vector_store %arg7[%c0_28, %c0_29], %36 {strides = array<i32>} : memref<4x64xf32, #tpu.memory_space<vmem>>, vector<4x64xf32>,
    %38 = vector.extract_strided_slice %35 {offsets = [0, 0], sizes = [2, 32], strides = [1, 1]} : vector<2x64xf32> to vector<2x32xf32>
    %c0_30 = arith.constant 0 : index
    %c0_31 = arith.constant 0 : index
    %39 = vector.load %arg7[%c0_30, %c0_31] : memref<4x64xf32, #tpu.memory_space<vmem>>, vector<2x32xf32>
    tpu.vector_store %arg7[%c0_30, %c0_31], %38 {strides = array<i32>} : memref<4x64xf32, #tpu.memory_space<vmem>>, vector<2x32xf32>,
    %40 = vector.extract_strided_slice %35 {offsets = [0, 32], sizes = [2, 32], strides = [1, 1]} : vector<2x64xf32> to vector<2x32xf32>
    %c2 = arith.constant 2 : index
    %c32_32 = arith.constant 32 : index
    %41 = vector.load %arg7[%c2, %c32_32] : memref<4x64xf32, #tpu.memory_space<vmem>>, vector<2x32xf32>
    tpu.vector_store %arg7[%c2, %c32_32], %40 {strides = array<i32>} : memref<4x64xf32, #tpu.memory_space<vmem>>, vector<2x32xf32>,
    %c200 = arith.constant 200 : index
    %c0_33 = arith.constant 0 : index
    %42 = vector.load %arg3[%c200, %c0_33] : memref<536x128xf32, #tpu.memory_space<vmem>>, vector<64x32xf32>
    %c0_34 = arith.constant 0 : index
    %c0_35 = arith.constant 0 : index
    %43 = vector.load %arg7[%c0_34, %c0_35] : memref<4x64xf32, #tpu.memory_space<vmem>>, vector<4x64xf32>
    %cst_36 = arith.constant dense<0.000000e+00> : vector<4x32xf32>
    %44 = tpu.matmul %43, %42, %cst_36 {dimension_numbers = #tpu.dot_dimension_numbers<[1], [0], [0], [1], [0, 0, 1, 1], [], []>} : vector<4x64xf32>, vector<64x32xf32>, vector<4x32xf32> -> vector<4x32xf32>
    %45 = vector.shape_cast %44 : vector<4x32xf32> to vector<4x1x32xf32>
    %46 = vector.broadcast %45 : vector<4x1x32xf32> to vector<4x8x32xf32>
    %47 = arith.mulf %46, %20 : vector<4x8x32xf32>
    %cst_37 = arith.constant dense<0.000000e+00> : vector<4x8xf32>
    %48 = vector.multi_reduction <add>, %47, %cst_37 [2] : vector<4x8x32xf32> to vector<4x8xf32>
    %cst_38 = arith.constant dense<0xFF800000> : vector<4xf32>
    %49 = vector.multi_reduction <maximumf>, %48, %cst_38 [1] : vector<4x8xf32> to vector<4xf32>
    %50 = vector.shape_cast %49 : vector<4xf32> to vector<4x1xf32>
    %51 = vector.broadcast %50 : vector<4x1xf32> to vector<4x8xf32>
    %52 = arith.subf %48, %51 : vector<4x8xf32>
    %53 = math.exp %52 : vector<4x8xf32>
    %cst_39 = arith.constant dense<0.000000e+00> : vector<4xf32>
    %54 = vector.multi_reduction <add>, %53, %cst_39 [1] : vector<4x8xf32> to vector<4xf32>
    %55 = vector.shape_cast %54 : vector<4xf32> to vector<4x1xf32>
    %56 = vector.broadcast %55 : vector<4x1xf32> to vector<4x8xf32>
    %57 = arith.divf %53, %56 : vector<4x8xf32>
    %58 = vector.shape_cast %57 : vector<4x8xf32> to vector<4x8x1xf32>
    %59 = vector.broadcast %58 : vector<4x8x1xf32> to vector<4x8x32xf32>
    %60 = arith.mulf %59, %20 : vector<4x8x32xf32>
    %cst_40 = arith.constant dense<0.000000e+00> : vector<4x32xf32>
    %61 = vector.multi_reduction <add>, %60, %cst_40 [1] : vector<4x8x32xf32> to vector<4x32xf32>
    %cst_41 = arith.constant 0.000000e+00 : f32
    %62 = vector.broadcast %cst_41 : f32 to vector<4x128xf32>
    %c0_42 = arith.constant 0 : index
    %c0_43 = arith.constant 0 : index
    %63 = vector.load %arg8[%c0_42, %c0_43] : memref<4x128xf32, #tpu.memory_space<vmem>>, vector<4x128xf32>
    tpu.vector_store %arg8[%c0_42, %c0_43], %62 {strides = array<i32>} : memref<4x128xf32, #tpu.memory_space<vmem>>, vector<4x128xf32>,
    %64 = vector.extract_strided_slice %61 {offsets = [0, 0], sizes = [2, 32], strides = [1, 1]} : vector<4x32xf32> to vector<2x32xf32>
    %c0_44 = arith.constant 0 : index
    %c0_45 = arith.constant 0 : index
    %65 = vector.load %arg8[%c0_44, %c0_45] : memref<4x128xf32, #tpu.memory_space<vmem>>, vector<2x32xf32>
    tpu.vector_store %arg8[%c0_44, %c0_45], %64 {strides = array<i32>} : memref<4x128xf32, #tpu.memory_space<vmem>>, vector<2x32xf32>,
    %66 = vector.extract_strided_slice %44 {offsets = [0, 0], sizes = [2, 32], strides = [1, 1]} : vector<4x32xf32> to vector<2x32xf32>
    %c0_46 = arith.constant 0 : index
    %c32_47 = arith.constant 32 : index
    %67 = vector.load %arg8[%c0_46, %c32_47] : memref<4x128xf32, #tpu.memory_space<vmem>>, vector<2x32xf32>
    tpu.vector_store %arg8[%c0_46, %c32_47], %66 {strides = array<i32>} : memref<4x128xf32, #tpu.memory_space<vmem>>, vector<2x32xf32>,
    %68 = vector.extract_strided_slice %61 {offsets = [2, 0], sizes = [2, 32], strides = [1, 1]} : vector<4x32xf32> to vector<2x32xf32>
    %c2_48 = arith.constant 2 : index
    %c64 = arith.constant 64 : index
    %69 = vector.load %arg8[%c2_48, %c64] : memref<4x128xf32, #tpu.memory_space<vmem>>, vector<2x32xf32>
    tpu.vector_store %arg8[%c2_48, %c64], %68 {strides = array<i32>} : memref<4x128xf32, #tpu.memory_space<vmem>>, vector<2x32xf32>,
    %70 = vector.extract_strided_slice %44 {offsets = [2, 0], sizes = [2, 32], strides = [1, 1]} : vector<4x32xf32> to vector<2x32xf32>
    %c2_49 = arith.constant 2 : index
    %c96 = arith.constant 96 : index
    %71 = vector.load %arg8[%c2_49, %c96] : memref<4x128xf32, #tpu.memory_space<vmem>>, vector<2x32xf32>
    tpu.vector_store %arg8[%c2_49, %c96], %70 {strides = array<i32>} : memref<4x128xf32, #tpu.memory_space<vmem>>, vector<2x32xf32>,
    %c264 = arith.constant 264 : index
    %c0_50 = arith.constant 0 : index
    %72 = vector.load %arg3[%c264, %c0_50] : memref<536x128xf32, #tpu.memory_space<vmem>>, vector<128x32xf32>
    %c0_51 = arith.constant 0 : index
    %c0_52 = arith.constant 0 : index
    %73 = vector.load %arg8[%c0_51, %c0_52] : memref<4x128xf32, #tpu.memory_space<vmem>>, vector<4x128xf32>
    %cst_53 = arith.constant dense<0.000000e+00> : vector<4x32xf32>
    %74 = tpu.matmul %73, %72, %cst_53 {dimension_numbers = #tpu.dot_dimension_numbers<[1], [0], [0], [1], [0, 0, 1, 1], [], []>} : vector<4x128xf32>, vector<128x32xf32>, vector<4x32xf32> -> vector<4x32xf32>
    %cst_54 = arith.constant 0.000000e+00 : f32
    %75 = vector.broadcast %cst_54 : f32 to vector<2x128xf32>
    %c0_55 = arith.constant 0 : index
    %c0_56 = arith.constant 0 : index
    %76 = vector.load %arg9[%c0_55, %c0_56] : memref<2x128xf32, #tpu.memory_space<vmem>>, vector<2x128xf32>
    tpu.vector_store %arg9[%c0_55, %c0_56], %75 {strides = array<i32>} : memref<2x128xf32, #tpu.memory_space<vmem>>, vector<2x128xf32>,
    %77 = vector.extract_strided_slice %74 {offsets = [0, 0], sizes = [2, 32], strides = [1, 1]} : vector<4x32xf32> to vector<2x32xf32>
    %c0_57 = arith.constant 0 : index
    %c0_58 = arith.constant 0 : index
    %78 = vector.load %arg9[%c0_57, %c0_58] : memref<2x128xf32, #tpu.memory_space<vmem>>, vector<2x32xf32>
    tpu.vector_store %arg9[%c0_57, %c0_58], %77 {strides = array<i32>} : memref<2x128xf32, #tpu.memory_space<vmem>>, vector<2x32xf32>,
    %79 = vector.extract_strided_slice %74 {offsets = [2, 0], sizes = [2, 32], strides = [1, 1]} : vector<4x32xf32> to vector<2x32xf32>
    %c0_59 = arith.constant 0 : index
    %c32_60 = arith.constant 32 : index
    %80 = vector.load %arg9[%c0_59, %c32_60] : memref<2x128xf32, #tpu.memory_space<vmem>>, vector<2x32xf32>
    tpu.vector_store %arg9[%c0_59, %c32_60], %79 {strides = array<i32>} : memref<2x128xf32, #tpu.memory_space<vmem>>, vector<2x32xf32>,
    %c0_61 = arith.constant 0 : index
    %c64_62 = arith.constant 64 : index
    %81 = vector.load %arg9[%c0_61, %c64_62] : memref<2x128xf32, #tpu.memory_space<vmem>>, vector<2x4xf32>
    tpu.vector_store %arg9[%c0_61, %c64_62], %0 {strides = array<i32>} : memref<2x128xf32, #tpu.memory_space<vmem>>, vector<2x4xf32>,
    %c392 = arith.constant 392 : index
    %c0_63 = arith.constant 0 : index
    %82 = vector.load %arg3[%c392, %c0_63] : memref<536x128xf32, #tpu.memory_space<vmem>>, vector<128x8xf32>
    %c528 = arith.constant 528 : index
    %c0_64 = arith.constant 0 : index
    %83 = vector.load %arg3[%c528, %c0_64] : memref<536x128xf32, #tpu.memory_space<vmem>>, vector<1x8xf32>
    %c0_65 = arith.constant 0 : index
    %c0_66 = arith.constant 0 : index
    %84 = vector.load %arg9[%c0_65, %c0_66] : memref<2x128xf32, #tpu.memory_space<vmem>>, vector<2x128xf32>
    %cst_67 = arith.constant dense<0.000000e+00> : vector<2x8xf32>
    %85 = tpu.matmul %84, %82, %cst_67 {dimension_numbers = #tpu.dot_dimension_numbers<[1], [0], [0], [1], [0, 0, 1, 1], [], []>} : vector<2x128xf32>, vector<128x8xf32>, vector<2x8xf32> -> vector<2x8xf32>
    %86 = vector.broadcast %83 : vector<1x8xf32> to vector<2x8xf32>
    %87 = arith.addf %85, %86 : vector<2x8xf32>
    %c0_68 = arith.constant 0 : index
    %c0_69 = arith.constant 0 : index
    %88 = vector.load %arg4[%c0_68, %c0_69] : memref<2x8xf32, #tpu.memory_space<vmem>>, vector<2x8xf32>
    tpu.vector_store %arg4[%c0_68, %c0_69], %87 {strides = array<i32>} : memref<2x8xf32, #tpu.memory_space<vmem>>, vector<2x8xf32>,
    return
  }
}

</mosaic_0001>

<llo_original>
// kernel: multi_modal_attn_forward.1
$region0: #{multi_modal_attn_forward.1}
  #allocation0 [shape = 'u32[]', space=smem, size = 0x4, offset = 0x4, fixed_abs, tag = 'smem constant byte address 0x4 - core index']
  #allocation1 [shape = 'u32[144,128]{1,0:T(1,128)}', space=vmem, size = 0x12000, scoped, tag = 'internal scratch']
  #allocation2 [shape = 'f32[32,32]{1,0:T(8,128)}', space=vmem, size = 0x4000, scoped, tag = 'scratch operand']
  #allocation3 [shape = 'f32[2,128]{1,0:T(2,128)}', space=vmem, size = 0x400, scoped, tag = 'scratch operand']
  #allocation4 [shape = 'f32[4,64]{1,0:T(4,128)}', space=vmem, size = 0x800, scoped, tag = 'scratch operand']
  #allocation5 [shape = 'f32[4,128]{1,0:T(4,128)}', space=vmem, size = 0x800, scoped, tag = 'scratch operand']
  #allocation6 [shape = 'f32[2,128]{1,0:T(2,128)}', space=vmem, size = 0x400, scoped, tag = 'scratch operand']
  %s0 = inlined_call_operand.vmem [shape: s32[2,8], index: 0, kind: input, shape index: {}]
  %s1 = inlined_call_operand.hbm [shape: f32[2,8,12], index: 1, kind: input, shape index: {}]
  %s2 = inlined_call_operand.vmem [shape: f32[2,4], index: 2, kind: input, shape index: {}]
  %s3 = inlined_call_operand.hbm [shape: f32[536,128], index: 3, kind: input, shape index: {}]
  %s4 = inlined_call_operand.hbm [shape: f32[2,8], index: 4, kind: output, shape index: {}]
  %s5 = sld [smem:[#allocation0]]
  $region34: #{multi_modal_attn_forward.1} parent=0
    _
  %s7 = ssub.s32 1, %s5
  %s8 = scalar_select 0, %s7, %s5
  $region1: #{multi_modal_attn_forward.1} parent=0
    #allocation7 [shape = 'u8[8192]{0}', space=vmem, size = 0x2000, scoped, tag = 'input window, operand 1, single buffered']
    #allocation8 [shape = 's32[1]{0}', space=sflag, size = 0x4, scoped, tag = 'scoped memory for multi_modal_attn_forward.1']
    #allocation9 [shape = 's32[1]{0}', space=sflag, size = 0x4, scoped, tag = 'scoped memory for multi_modal_attn_forward.1']
    #allocation10 [shape = 'u8[274432]{0}', space=vmem, size = 0x43000, scoped, tag = 'input window, operand 3, single buffered']
    #allocation11 [shape = 's32[1]{0}', space=sflag, size = 0x4, scoped, tag = 'scoped memory for multi_modal_attn_forward.1']
    #allocation12 [shape = 'u8[1024]{0}', space=vmem, size = 0x400, scoped, tag = 'output window, operand 0, single buffered']
    %9 = vsyncpa [#allocation8], 0
    %10 = vsyncpa [#allocation11], 0
    %11 = vsyncpa [#allocation9], 0
    // Predicated region
    $region2: #{multi_modal_attn_forward.1} parent=1 // pred_check
      _
    $region3: #{multi_modal_attn_forward.1} parent=1 // pred_check_branch
      %13 = sbr.rel (0) target = $region5
    $region4: #{multi_modal_attn_forward.1} parent=1 // pred_region
      _
    $region5: #{multi_modal_attn_forward.1} parent=1 // pred_fallthru
      _
    // Predicated region
    $region6: #{multi_modal_attn_forward.1} parent=1 // pred_check
      _
    $region7: #{multi_modal_attn_forward.1} parent=1 // pred_check_branch
      %15 = sbr.rel (0) target = $region9
    $region8: #{multi_modal_attn_forward.1} parent=1 // pred_region
      %s17 = ssub.s32 256, 256
      %18 = vsyncadd [#allocation8], %s17
      %s19 = sshll.u32 [#allocation7], 4
      %s20 = int_to_ptr.vmem [resolvable:$true] %s19
      %25 = dma.hbm_to_vmem [thread:$0]  %s1, 256, %s20, [#allocation8], 128, 128, 8
    $region9: #{multi_modal_attn_forward.1} parent=1 // pred_fallthru
      _
    // Predicated region
    $region10: #{multi_modal_attn_forward.1} parent=1 // pred_check
      _
    $region11: #{multi_modal_attn_forward.1} parent=1 // pred_check_branch
      %27 = sbr.rel (0) target = $region13
    $region12: #{multi_modal_attn_forward.1} parent=1 // pred_region
      _
    $region13: #{multi_modal_attn_forward.1} parent=1 // pred_fallthru
      _
    // Predicated region
    $region14: #{multi_modal_attn_forward.1} parent=1 // pred_check
      _
    $region15: #{multi_modal_attn_forward.1} parent=1 // pred_check_branch
      %29 = sbr.rel (0) target = $region17
    $region16: #{multi_modal_attn_forward.1} parent=1 // pred_region
      %s31 = ssub.s32 8576, 8576
      %32 = vsyncadd [#allocation11], %s31
      %s33 = sshll.u32 [#allocation10], 4
      %s34 = int_to_ptr.vmem [resolvable:$true] %s33
      %39 = dma.hbm_to_vmem [thread:$0]  %s3, 8576, %s34, [#allocation11], 128, 128, 8
    $region17: #{multi_modal_attn_forward.1} parent=1 // pred_fallthru
      _
    // Predicated region
    $region18: #{multi_modal_attn_forward.1} parent=1 // pred_check
      _
    $region19: #{multi_modal_attn_forward.1} parent=1 // pred_check_branch
      %41 = sbr.rel (0) target = $region21
    $region20: #{multi_modal_attn_forward.1} parent=1 // pred_region
      %42 = dma.done [#allocation8], 256
    $region21: #{multi_modal_attn_forward.1} parent=1 // pred_fallthru
      _
    // Predicated region
    $region22: #{multi_modal_attn_forward.1} parent=1 // pred_check
      _
    $region23: #{multi_modal_attn_forward.1} parent=1 // pred_check_branch
      %44 = sbr.rel (0) target = $region25
    $region24: #{multi_modal_attn_forward.1} parent=1 // pred_region
      %45 = dma.done [#allocation11], 8576
    $region25: #{multi_modal_attn_forward.1} parent=1 // pred_fallthru
      _
    %v46 = vld [vmem:[%s2] sm:$0x3]
    %v47 = vld [vmem:[%s0] sm:$0x3]
    %v48 = vlaneseq
    %v49 = vand.u32 %v48, 127
    %v50 = vlaneseq
    %v51 = vshrl.u32 %v50, 7
    %v52 = vsub.s32 0, %v51
    %v53 = vrot.slane %v47, %v52
    %55 = vbcast.lane.b32.xlu0 %v53, 256
    %v56 = vpop.permute.xlu0 %55
    %v57 = vlaneseq
    %v58 = vshrl.u32 %v57, 7
    %v59 = vsub.s32 1, %v58
    %v60 = vrot.slane %v47, %v59
    %62 = vbcast.lane.b32.xlu0 %v60, 256
    %v63 = vpop.permute.xlu0 %62
    %vm64 = vcmp.eq.s32.totalorder %v56, %v49
    %vm65 = vcmp.eq.s32.totalorder %v63, %v49
    %v66 = vsel %vm64, 1, 0
    %v67 = vsel %vm65, 1, 0
    %v68 = vcvt.s32.f32 %v66
    %v69 = vcvt.s32.f32 %v67
    %v70 = vld [vmem:[#allocation10] sm:$0xff]
    %v71 = vld [vmem:[#allocation10 + $0x8] sm:$0xff]
    %v72 = vld [vmem:[#allocation10 + $0x10] sm:$0xff]
    %v73 = vld [vmem:[#allocation10 + $0x18] sm:$0xff]
    %v74 = vld [vmem:[#allocation10 + $0x20] sm:$0xff]
    %v75 = vld [vmem:[#allocation10 + $0x28] sm:$0xff]
    %v76 = vld [vmem:[#allocation10 + $0x30] sm:$0x3]
    %vm77 = vcmask 408576
    %v79 = vsel %vm77, %v68, 0
    %v82 = vsel %vm77, %v69, 0
    %vm84 = vcmask 1041408
    %v86 = vsel %vm84, %v76, 0
    %88 = vmatprep.subr.mxu0 0.0
    %89 = vmatpush1.msra.mxu0 %v70
    %90 = vmatprep.subr.mxu0 0.0
    %91 = vmatpush1.msra.mxu0 %v71
    %92 = vmatprep.subr.mxu0 0.0
    %93 = vmatpush1.msra.mxu0 %v72
    %94 = vmatprep.subr.mxu0 0.0
    %95 = vmatpush1.msra.mxu0 %v73
    %96 = vmatprep.subr.mxu0 0.0
    %97 = vmatpush1.msra.mxu0 %v74
    %98 = vmatprep.subr.mxu0 0.0
    %99 = vmatpush1.msra.mxu0 %v75
    %100 = vmatprep.subr.mxu0 0.0
    %101 = vmatpush1.msra.mxu0 %v86
    %102 = vmatprep.subr.mxu0 0.0
    %103 = vmatpush1.msra.mxu0 0.0
    %104 = vmatprep.subr.mxu0 0.0
    %105 = vmatpush1.msra.mxu0 0.0
    %106 = vmatprep.subr.mxu0 0.0
    %107 = vmatpush1.msra.mxu0 0.0
    %108 = vmatprep.subr.mxu0 0.0
    %109 = vmatpush1.msra.mxu0 0.0
    %110 = vmatprep.subr.mxu0 0.0
    %111 = vmatpush1.msra.mxu0 0.0
    %112 = vmatprep.subr.mxu0 0.0
    %113 = vmatpush1.msra.mxu0 0.0
    %114 = vmatprep.subr.mxu0 0.0
    %115 = vmatpush1.msra.mxu0 0.0
    %116 = vmatprep.subr.mxu0 0.0
    %117 = vmatpush1.msra.mxu0 0.0
    %118 = vmatprep.subr.mxu0 0.0
    %119 = vmatpush1.msra.mxu0 0.0
    %120 = vmatprep.subr.mxu0 0.0
    %121 = vmatpush1.msra.mxu0 0.0
    %122 = vmatprep.subr.mxu0 0.0
    %123 = vmatpush1.msra.mxu0 0.0
    %124 = vmatprep.subr.mxu0 0.0
    %125 = vmatpush1.msra.mxu0 0.0
    %126 = vmatprep.subr.mxu0 0.0
    %127 = vmatpush1.msra.mxu0 0.0
    %128 = vmatprep.subr.mxu0 0.0
    %129 = vmatpush1.msra.mxu0 0.0
    %130 = vmatprep.subr.mxu0 0.0
    %131 = vmatpush1.msra.mxu0 0.0
    %132 = vmatprep.subr.mxu0 0.0
    %133 = vmatpush1.msra.mxu0 0.0
    %134 = vmatprep.subr.mxu0 0.0
    %135 = vmatpush1.msra.mxu0 0.0
    %136 = vmatprep.subr.mxu0 0.0
    %137 = vmatpush1.msra.mxu0 0.0
    %138 = vmatprep.subr.mxu0 0.0
    %139 = vmatpush1.msra.mxu0 0.0
    %140 = vmatprep.subr.mxu0 0.0
    %141 = vmatpush1.msra.mxu0 0.0
    %142 = vmatprep.subr.mxu0 0.0
    %143 = vmatpush1.msra.mxu0 0.0
    %144 = vmatprep.subr.mxu0 0.0
    %145 = vmatpush1.msra.mxu0 0.0
    %146 = vmatprep.subr.mxu0 0.0
    %147 = vmatpush1.msra.mxu0 0.0
    %148 = vmatprep.subr.mxu0 0.0
    %149 = vmatpush1.msra.mxu0 0.0
    %150 = vmatprep.subr.mxu0 0.0
    %151 = vmatpush1.msra.mxu0 0.0
    %152 = vmatprep.mubr.f32.mxu0 0.0
    %153 = vmatmul.mubr.f32.gmra.mrb[0].mxu0 %v79
    %v154 = vpop.f32.mrb[0].mxu0
    %v155 = vadd.f32 0.0, %v154
    %v156 = vpop.f32.mrb[0].mxu0
    %157 = vmatprep.mubr.f32.mxu0 0.0
    %158 = vmatmul.mubr.f32.gmra.mrb[0].mxu0 %v82
    %v159 = vpop.f32.mrb[0].mxu0
    %v160 = vadd.f32 0.0, %v159
    %v161 = vpop.f32.mrb[0].mxu0
    %162 = vdwg.mxu0
    %v163 = vtanh.pop %v155
    %v164 = vtanh.pop %v160
    %vm165 = vcmask 261120
    %166 = vst.msk [vmem:[#allocation2] sm:$0xff] %vm165, %v163
    %167 = vst.msk [vmem:[#allocation2 + $0x8] sm:$0xff] %vm165, %v164
    %v168 = vld [vmem:[#allocation7] sm:$0xff]
    %v169 = vld [vmem:[#allocation7 + $0x8] sm:$0xff]
    %v170 = vld [vmem:[#allocation10 + $0x38] sm:$0xff]
    %v171 = vld [vmem:[#allocation10 + $0x40] sm:$0xf]
    %vm172 = vcmask 97280
    %v174 = vsel %vm172, %v168, 0
    %v177 = vsel %vm172, %v169, 0
    %vm179 = vcmask 1043456
    %v181 = vsel %vm179, %v171, 0
    %183 = vmatprep.subr.mxu0 0.0
    %184 = vmatpush1.msra.mxu0 %v170
    %185 = vmatprep.subr.mxu0 0.0
    %186 = vmatpush1.msra.mxu0 %v181
    %187 = vmatprep.subr.mxu0 0.0
    %188 = vmatpush1.msra.mxu0 0.0
    %189 = vmatprep.subr.mxu0 0.0
    %190 = vmatpush1.msra.mxu0 0.0
    %191 = vmatprep.subr.mxu0 0.0
    %192 = vmatpush1.msra.mxu0 0.0
    %193 = vmatprep.subr.mxu0 0.0
    %194 = vmatpush1.msra.mxu0 0.0
    %195 = vmatprep.subr.mxu0 0.0
    %196 = vmatpush1.msra.mxu0 0.0
    %197 = vmatprep.subr.mxu0 0.0
    %198 = vmatpush1.msra.mxu0 0.0
    %199 = vmatprep.subr.mxu0 0.0
    %200 = vmatpush1.msra.mxu0 0.0
    %201 = vmatprep.subr.mxu0 0.0
    %202 = vmatpush1.msra.mxu0 0.0
    %203 = vmatprep.subr.mxu0 0.0
    %204 = vmatpush1.msra.mxu0 0.0
    %205 = vmatprep.subr.mxu0 0.0
    %206 = vmatpush1.msra.mxu0 0.0
    %207 = vmatprep.subr.mxu0 0.0
    %208 = vmatpush1.msra.mxu0 0.0
    %209 = vmatprep.subr.mxu0 0.0
    %210 = vmatpush1.msra.mxu0 0.0
    %211 = vmatprep.subr.mxu0 0.0
    %212 = vmatpush1.msra.mxu0 0.0
    %213 = vmatprep.subr.mxu0 0.0
    %214 = vmatpush1.msra.mxu0 0.0
    %215 = vmatprep.subr.mxu0 0.0
    %216 = vmatpush1.msra.mxu0 0.0
    %217 = vmatprep.subr.mxu0 0.0
    %218 = vmatpush1.msra.mxu0 0.0
    %219 = vmatprep.subr.mxu0 0.0
    %220 = vmatpush1.msra.mxu0 0.0
    %221 = vmatprep.subr.mxu0 0.0
    %222 = vmatpush1.msra.mxu0 0.0
    %223 = vmatprep.subr.mxu0 0.0
    %224 = vmatpush1.msra.mxu0 0.0
    %225 = vmatprep.subr.mxu0 0.0
    %226 = vmatpush1.msra.mxu0 0.0
    %227 = vmatprep.subr.mxu0 0.0
    %228 = vmatpush1.msra.mxu0 0.0
    %229 = vmatprep.subr.mxu0 0.0
    %230 = vmatpush1.msra.mxu0 0.0
    %231 = vmatprep.subr.mxu0 0.0
    %232 = vmatpush1.msra.mxu0 0.0
    %233 = vmatprep.subr.mxu0 0.0
    %234 = vmatpush1.msra.mxu0 0.0
    %235 = vmatprep.subr.mxu0 0.0
    %236 = vmatpush1.msra.mxu0 0.0
    %237 = vmatprep.subr.mxu0 0.0
    %238 = vmatpush1.msra.mxu0 0.0
    %239 = vmatprep.subr.mxu0 0.0
    %240 = vmatpush1.msra.mxu0 0.0
    %241 = vmatprep.subr.mxu0 0.0
    %242 = vmatpush1.msra.mxu0 0.0
    %243 = vmatprep.subr.mxu0 0.0
    %244 = vmatpush1.msra.mxu0 0.0
    %245 = vmatprep.subr.mxu0 0.0
    %246 = vmatpush1.msra.mxu0 0.0
    %247 = vmatprep.mubr.f32.mxu0 0.0
    %248 = vmatmul.mubr.f32.gmra.mrb[0].mxu0 %v174
    %v249 = vpop.f32.mrb[0].mxu0
    %v250 = vadd.f32 0.0, %v249
    %v251 = vpop.f32.mrb[0].mxu0
    %252 = vmatprep.mubr.f32.mxu0 0.0
    %253 = vmatmul.mubr.f32.gmra.mrb[0].mxu0 %v177
    %v254 = vpop.f32.mrb[0].mxu0
    %v255 = vadd.f32 0.0, %v254
    %v256 = vpop.f32.mrb[0].mxu0
    %257 = vdwg.mxu0
    %v258 = vtanh.pop %v250
    %v259 = vtanh.pop %v255
    %260 = vst.msk [vmem:[#allocation2 + $0x10] sm:$0xff] %vm165, %v258
    %261 = vst.msk [vmem:[#allocation2 + $0x18] sm:$0xff] %vm165, %v259
    %v262 = vld [vmem:[#allocation2] sm:$0xff]
    %v263 = vld [vmem:[#allocation2 + $0x8] sm:$0xff]
    %v264 = vld [vmem:[#allocation2 + $0x10] sm:$0xff]
    %v265 = vld [vmem:[#allocation2 + $0x18] sm:$0xff]
    %266 = vst [vmem:[#allocation3] sm:$0x3] 0.0
    %v269 = vrot.slane %v265, 7
    %vm272 = vcmask 261127
    %273 = vst.msk [vmem:[#allocation3 - $0x7] sm:$0x80] %vm272, %v264
    %vm274 = vcmask 253952
    %275 = vst.msk [vmem:[#allocation3 + $0x1] sm:$0x1] %vm274, %v269
    %277 = vrot.lane.b32.xlu0 %v46, 32
    %v278 = vpop.permute.xlu0 %277
    %vm280 = vcmask 288000
    %281 = vst.msk [vmem:[#allocation3] sm:$0x3] %vm280, %v278
    %v284 = vrot.slane %v263, 7
    %285 = vrot.lane.b32.xlu0 %v262, 36
    %v286 = vpop.permute.xlu0 %285
    %287 = vrot.lane.b32.xlu0 %v284, 36
    %v288 = vpop.permute.xlu0 %287
    %vm291 = vcmask 556327
    %292 = vst.msk [vmem:[#allocation3 - $0x7] sm:$0x80] %vm291, %v286
    %vm293 = vcmask 549152
    %294 = vst.msk [vmem:[#allocation3 + $0x1] sm:$0x1] %vm293, %v288
    %v295 = vld [vmem:[#allocation10 + $0x48] sm:$0xff]
    %v296 = vld [vmem:[#allocation10 + $0x50] sm:$0xff]
    %v297 = vld [vmem:[#allocation10 + $0x58] sm:$0xff]
    %v298 = vld [vmem:[#allocation10 + $0x60] sm:$0xff]
    %v299 = vld [vmem:[#allocation10 + $0x68] sm:$0xff]
    %v300 = vld [vmem:[#allocation10 + $0x70] sm:$0xff]
    %v301 = vld [vmem:[#allocation10 + $0x78] sm:$0xff]
    %v302 = vld [vmem:[#allocation10 + $0x80] sm:$0xff]
    %v303 = vld [vmem:[#allocation10 + $0x88] sm:$0xff]
    %v304 = vld [vmem:[#allocation10 + $0x90] sm:$0xff]
    %v305 = vld [vmem:[#allocation10 + $0x98] sm:$0xff]
    %v306 = vld [vmem:[#allocation10 + $0xa0] sm:$0xff]
    %v307 = vld [vmem:[#allocation10 + $0xa8] sm:$0xff]
    %v308 = vld [vmem:[#allocation10 + $0xb0] sm:$0xff]
    %v309 = vld [vmem:[#allocation10 + $0xb8] sm:$0xff]
    %v310 = vld [vmem:[#allocation10 + $0xc0] sm:$0xff]
    %v311 = vld [vmem:[#allocation10 + $0x208] sm:$0x1]
    %v312 = vld [vmem:[#allocation3] sm:$0x3]
    %v313 = vlaneseq
    %v314 = vshrl.u32 %v313, 7
    %v315 = vsub.s32 0, %v314
    %v316 = vrot.slane %v311, %v315
    %317 = vmatprep.subr.mxu0 0.0
    %318 = vmatpush1.msra.mxu0 %v295
    %319 = vmatprep.subr.mxu0 0.0
    %320 = vmatpush1.msra.mxu0 %v296
    %321 = vmatprep.subr.mxu0 0.0
    %322 = vmatpush1.msra.mxu0 %v297
    %323 = vmatprep.subr.mxu0 0.0
    %324 = vmatpush1.msra.mxu0 %v298
    %325 = vmatprep.subr.mxu0 0.0
    %326 = vmatpush1.msra.mxu0 %v299
    %327 = vmatprep.subr.mxu0 0.0
    %328 = vmatpush1.msra.mxu0 %v300
    %329 = vmatprep.subr.mxu0 0.0
    %330 = vmatpush1.msra.mxu0 %v301
    %331 = vmatprep.subr.mxu0 0.0
    %332 = vmatpush1.msra.mxu0 %v302
    %333 = vmatprep.subr.mxu0 0.0
    %334 = vmatpush1.msra.mxu0 %v303
    %335 = vmatprep.subr.mxu0 0.0
    %336 = vmatpush1.msra.mxu0 %v304
    %337 = vmatprep.subr.mxu0 0.0
    %338 = vmatpush1.msra.mxu0 %v305
    %339 = vmatprep.subr.mxu0 0.0
    %340 = vmatpush1.msra.mxu0 %v306
    %341 = vmatprep.subr.mxu0 0.0
    %342 = vmatpush1.msra.mxu0 %v307
    %343 = vmatprep.subr.mxu0 0.0
    %344 = vmatpush1.msra.mxu0 %v308
    %345 = vmatprep.subr.mxu0 0.0
    %346 = vmatpush1.msra.mxu0 %v309
    %347 = vmatprep.subr.mxu0 0.0
    %348 = vmatpush1.msra.mxu0 %v310
    %349 = vmatprep.subr.mxu0 0.0
    %350 = vmatpush1.msra.mxu0 0.0
    %351 = vmatprep.subr.mxu0 0.0
    %352 = vmatpush1.msra.mxu0 0.0
    %353 = vmatprep.subr.mxu0 0.0
    %354 = vmatpush1.msra.mxu0 0.0
    %355 = vmatprep.subr.mxu0 0.0
    %356 = vmatpush1.msra.mxu0 0.0
    %357 = vmatprep.subr.mxu0 0.0
    %358 = vmatpush1.msra.mxu0 0.0
    %359 = vmatprep.subr.mxu0 0.0
    %360 = vmatpush1.msra.mxu0 0.0
    %361 = vmatprep.subr.mxu0 0.0
    %362 = vmatpush1.msra.mxu0 0.0
    %363 = vmatprep.subr.mxu0 0.0
    %364 = vmatpush1.msra.mxu0 0.0
    %365 = vmatprep.subr.mxu0 0.0
    %366 = vmatpush1.msra.mxu0 0.0
    %367 = vmatprep.subr.mxu0 0.0
    %368 = vmatpush1.msra.mxu0 0.0
    %369 = vmatprep.subr.mxu0 0.0
    %370 = vmatpush1.msra.mxu0 0.0
    %371 = vmatprep.subr.mxu0 0.0
    %372 = vmatpush1.msra.mxu0 0.0
    %373 = vmatprep.subr.mxu0 0.0
    %374 = vmatpush1.msra.mxu0 0.0
    %375 = vmatprep.subr.mxu0 0.0
    %376 = vmatpush1.msra.mxu0 0.0
    %377 = vmatprep.subr.mxu0 0.0
    %378 = vmatpush1.msra.mxu0 0.0
    %379 = vmatprep.subr.mxu0 0.0
    %380 = vmatpush1.msra.mxu0 0.0
    %381 = vmatprep.mubr.f32.mxu0 0.0
    %382 = vmatmul.mubr.f32.gmra.mrb[0].mxu0 %v312
    %v383 = vpop.f32.mrb[0].mxu0
    %v384 = vadd.f32 %v316, %v383
    %v385 = vpop.f32.mrb[0].mxu0
    %386 = vdwg.mxu0
    %vm387 = vcmask 519168
    %388 = vst.msk [vmem:[#allocation4] sm:$0xf] %vm387, 0.0
    %vm389 = vcmask 254976
    %390 = vst.msk [vmem:[#allocation4] sm:$0x3] %vm389, %v384
    %vm391 = vcmask 517376
    %392 = vst.msk [vmem:[#allocation4 + $0x2] sm:$0x3] %vm391, %v384
    %v393 = vld [vmem:[#allocation10 + $0xc8] sm:$0xff]
    %v394 = vld [vmem:[#allocation10 + $0xd0] sm:$0xff]
    %v395 = vld [vmem:[#allocation10 + $0xd8] sm:$0xff]
    %v396 = vld [vmem:[#allocation10 + $0xe0] sm:$0xff]
    %v397 = vld [vmem:[#allocation10 + $0xe8] sm:$0xff]
    %v398 = vld [vmem:[#allocation10 + $0xf0] sm:$0xff]
    %v399 = vld [vmem:[#allocation10 + $0xf8] sm:$0xff]
    %v400 = vld [vmem:[#allocation10 + $0x100] sm:$0xff]
    %v401 = vld [vmem:[#allocation4] sm:$0xf]
    %vm402 = vcmask 523264
    %v404 = vsel %vm402, %v401, 0
    %406 = vmatprep.subr.mxu0 0.0
    %407 = vmatpush1.msra.mxu0 %v393
    %408 = vmatprep.subr.mxu0 0.0
    %409 = vmatpush1.msra.mxu0 %v394
    %410 = vmatprep.subr.mxu0 0.0
    %411 = vmatpush1.msra.mxu0 %v395
    %412 = vmatprep.subr.mxu0 0.0
    %413 = vmatpush1.msra.mxu0 %v396
    %414 = vmatprep.subr.mxu0 0.0
    %415 = vmatpush1.msra.mxu0 %v397
    %416 = vmatprep.subr.mxu0 0.0
    %417 = vmatpush1.msra.mxu0 %v398
    %418 = vmatprep.subr.mxu0 0.0
    %419 = vmatpush1.msra.mxu0 %v399
    %420 = vmatprep.subr.mxu0 0.0
    %421 = vmatpush1.msra.mxu0 %v400
    %422 = vmatprep.subr.mxu0 0.0
    %423 = vmatpush1.msra.mxu0 0.0
    %424 = vmatprep.subr.mxu0 0.0
    %425 = vmatpush1.msra.mxu0 0.0
    %426 = vmatprep.subr.mxu0 0.0
    %427 = vmatpush1.msra.mxu0 0.0
    %428 = vmatprep.subr.mxu0 0.0
    %429 = vmatpush1.msra.mxu0 0.0
    %430 = vmatprep.subr.mxu0 0.0
    %431 = vmatpush1.msra.mxu0 0.0
    %432 = vmatprep.subr.mxu0 0.0
    %433 = vmatpush1.msra.mxu0 0.0
    %434 = vmatprep.subr.mxu0 0.0
    %435 = vmatpush1.msra.mxu0 0.0
    %436 = vmatprep.subr.mxu0 0.0
    %437 = vmatpush1.msra.mxu0 0.0
    %438 = vmatprep.subr.mxu0 0.0
    %439 = vmatpush1.msra.mxu0 0.0
    %440 = vmatprep.subr.mxu0 0.0
    %441 = vmatpush1.msra.mxu0 0.0
    %442 = vmatprep.subr.mxu0 0.0
    %443 = vmatpush1.msra.mxu0 0.0
    %444 = vmatprep.subr.mxu0 0.0
    %445 = vmatpush1.msra.mxu0 0.0
    %446 = vmatprep.subr.mxu0 0.0
    %447 = vmatpush1.msra.mxu0 0.0
    %448 = vmatprep.subr.mxu0 0.0
    %449 = vmatpush1.msra.mxu0 0.0
    %450 = vmatprep.subr.mxu0 0.0
    %451 = vmatpush1.msra.mxu0 0.0
    %452 = vmatprep.subr.mxu0 0.0
    %453 = vmatpush1.msra.mxu0 0.0
    %454 = vmatprep.subr.mxu0 0.0
    %455 = vmatpush1.msra.mxu0 0.0
    %456 = vmatprep.subr.mxu0 0.0
    %457 = vmatpush1.msra.mxu0 0.0
    %458 = vmatprep.subr.mxu0 0.0
    %459 = vmatpush1.msra.mxu0 0.0
    %460 = vmatprep.subr.mxu0 0.0
    %461 = vmatpush1.msra.mxu0 0.0
    %462 = vmatprep.subr.mxu0 0.0
    %463 = vmatpush1.msra.mxu0 0.0
    %464 = vmatprep.subr.mxu0 0.0
    %465 = vmatpush1.msra.mxu0 0.0
    %466 = vmatprep.subr.mxu0 0.0
    %467 = vmatpush1.msra.mxu0 0.0
    %468 = vmatprep.subr.mxu0 0.0
    %469 = vmatpush1.msra.mxu0 0.0
    %470 = vmatprep.mubr.f32.mxu0 0.0
    %471 = vmatmul.mubr.f32.gmra.mrb[0].mxu0 %v404
    %v472 = vpop.f32.mrb[0].mxu0
    %v473 = vadd.f32 0.0, %v472
    %v474 = vpop.f32.mrb[0].mxu0
    %475 = vdwg.mxu0
    %v478 = vunpack.c.l.s4 1966171168
    %v479 = vunpack.c.0.s8 %v478
    %v480 = vlaneseq
    %v481 = vshrl.u32 %v480, 7
    %v482 = vsub.s32 %v479, %v481
    %v483 = vrot.slane %v473, %v482
    %v484 = vcombine.high %v483, %v483
    %v486 = vunpack.c.l.s4 1966171168
    %v487 = vunpack.c.0.s8 %v486
    %v488 = vlaneseq
    %v489 = vshrl.u32 %v488, 7
    %v490 = vsub.s32 %v487, %v489
    %v491 = vrot.slane %v483, %v490
    %v493 = vunpack.c.l.s4 1966171168
    %v494 = vunpack.c.0.s8 %v493
    %v495 = vlaneseq
    %v496 = vshrl.u32 %v495, 7
    %v497 = vsub.s32 %v494, %v496
    %v498 = vrot.slane %v484, %v497
    %v499 = vcombine.high %v491, %v491
    %v500 = vcombine.high %v498, %v498
    %v501 = vlaneseq
    %v502 = vshrl.u32 %v501, 7
    %v503 = vsub.s32 0, %v502
    %v504 = vrot.slane %v491, %v503
    %v505 = vlaneseq
    %v506 = vshrl.u32 %v505, 7
    %v507 = vsub.s32 0, %v506
    %v508 = vrot.slane %v498, %v507
    %v509 = vlaneseq
    %v510 = vshrl.u32 %v509, 7
    %v511 = vsub.s32 0, %v510
    %v512 = vrot.slane %v499, %v511
    %v513 = vlaneseq
    %v514 = vshrl.u32 %v513, 7
    %v515 = vsub.s32 0, %v514
    %v516 = vrot.slane %v500, %v515
    %v521 = vmul.f32 %v504, %v262
    %v522 = vmul.f32 %v508, %v263
    %v523 = vmul.f32 %v512, %v264
    %v524 = vmul.f32 %v516, %v265
    %v525 = vsel %vm165, %v521, 0.0
    %526 = vadd.xlane.f32.xlu0 %v525
    %v527 = vpop.xlane.xlu0 %526
    %v528 = vsel %vm165, %v522, 0.0
    %529 = vadd.xlane.f32.xlu0 %v528
    %v530 = vpop.xlane.xlu0 %529
    %v531 = vsel %vm165, %v523, 0.0
    %532 = vadd.xlane.f32.xlu0 %v531
    %v533 = vpop.xlane.xlu0 %532
    %v534 = vsel %vm165, %v524, 0.0
    %535 = vadd.xlane.f32.xlu0 %v534
    %v536 = vpop.xlane.xlu0 %535
    %v541 = vlaneseq
    %v542 = vshrl.u32 %v541, 7
    %v543 = vsub.s32 %v49, %v542
    %v544 = vrot.slane %v527, %v543
    %v545 = vlaneseq
    %v546 = vshrl.u32 %v545, 7
    %v547 = vsub.s32 %v49, %v546
    %v548 = vrot.slane %v530, %v547
    %v549 = vlaneseq
    %v550 = vshrl.u32 %v549, 7
    %v551 = vsub.s32 %v49, %v550
    %v552 = vrot.slane %v533, %v551
    %v553 = vlaneseq
    %v554 = vshrl.u32 %v553, 7
    %v555 = vsub.s32 %v49, %v554
    %v556 = vrot.slane %v536, %v555
    %vm557 = vcmask 1041409
    %v558 = vsel %vm557, %v548, %v544
    %vm559 = vcmask 1042434
    %v560 = vsel %vm559, %v552, %v558
    %vm561 = vcmask 1043459
    %v562 = vsel %vm561, %v556, %v560
    %vm564 = vcmask 60416
    %v565 = vsel %vm564, %v562, -inf
    %566 = vmax.xlane.f32.xlu0 %v565
    %v567 = vpop.xlane.xlu0 %566
    %v569 = vlaneseq
    %v570 = vshrl.u32 %v569, 7
    %v571 = vsub.s32 0, %v570
    %v572 = vrot.slane %v567, %v571
    %v573 = vlaneseq
    %v574 = vshrl.u32 %v573, 7
    %v575 = vsub.s32 1, %v574
    %v576 = vrot.slane %v567, %v575
    %v577 = vlaneseq
    %v578 = vshrl.u32 %v577, 7
    %v579 = vsub.s32 2, %v578
    %v580 = vrot.slane %v567, %v579
    %v581 = vlaneseq
    %v582 = vshrl.u32 %v581, 7
    %v583 = vsub.s32 3, %v582
    %v584 = vrot.slane %v567, %v583
    %v589 = vsub.f32 %v527, %v572
    %v590 = vsub.f32 %v530, %v576
    %v591 = vsub.f32 %v533, %v580
    %v592 = vsub.f32 %v536, %v584
    %v593 = vmul.f32 %v589, 1.442695
    %v594 = vpow.pop %v593
    %v595 = vmul.f32 %v590, 1.442695
    %v596 = vpow.pop %v595
    %v597 = vmul.f32 %v591, 1.442695
    %v598 = vpow.pop %v597
    %v599 = vmul.f32 %v592, 1.442695
    %v600 = vpow.pop %v599
    %605 = vset.pattern.permute.xlu0 0
    %606 = vperm.xlu0 %605, %v594
    %v607 = vpop.permute.xlu0 %606
    %608 = vset.pattern.permute.xlu0 0
    %609 = vperm.xlu0 %608, %v596
    %v610 = vpop.permute.xlu0 %609
    %611 = vset.pattern.permute.xlu0 0
    %612 = vperm.xlu0 %611, %v598
    %v613 = vpop.permute.xlu0 %612
    %614 = vset.pattern.permute.xlu0 0
    %615 = vperm.xlu0 %614, %v600
    %v616 = vpop.permute.xlu0 %615
    %v617 = vlaneseq
    %v618 = vshrl.u32 %v617, 7
    %v619 = vsub.s32 %v49, %v618
    %v620 = vrot.slane %v607, %v619
    %v621 = vlaneseq
    %v622 = vshrl.u32 %v621, 7
    %v623 = vsub.s32 %v49, %v622
    %v624 = vrot.slane %v610, %v623
    %v625 = vlaneseq
    %v626 = vshrl.u32 %v625, 7
    %v627 = vsub.s32 %v49, %v626
    %v628 = vrot.slane %v613, %v627
    %v629 = vlaneseq
    %v630 = vshrl.u32 %v629, 7
    %v631 = vsub.s32 %v49, %v630
    %v632 = vrot.slane %v616, %v631
    %v633 = vsel %vm557, %v624, %v620
    %v634 = vsel %vm559, %v628, %v633
    %v635 = vsel %vm561, %v632, %v634
    %v637 = vsel %vm564, %v635, 0.0
    %638 = vadd.xlane.f32.xlu0 %v637
    %v639 = vpop.xlane.xlu0 %638
    %v641 = vlaneseq
    %v642 = vshrl.u32 %v641, 7
    %v643 = vsub.s32 0, %v642
    %v644 = vrot.slane %v639, %v643
    %v645 = vlaneseq
    %v646 = vshrl.u32 %v645, 7
    %v647 = vsub.s32 1, %v646
    %v648 = vrot.slane %v639, %v647
    %v649 = vlaneseq
    %v650 = vshrl.u32 %v649, 7
    %v651 = vsub.s32 2, %v650
    %v652 = vrot.slane %v639, %v651
    %v653 = vlaneseq
    %v654 = vshrl.u32 %v653, 7
    %v655 = vsub.s32 3, %v654
    %v656 = vrot.slane %v639, %v655
    %v661 = vrcp.pop %v644
    %v662 = vmul.f32 %v594, %v661
    %v663 = vrcp.pop %v648
    %v664 = vmul.f32 %v596, %v663
    %v665 = vrcp.pop %v652
    %v666 = vmul.f32 %v598, %v665
    %v667 = vrcp.pop %v656
    %v668 = vmul.f32 %v600, %v667
    %670 = vset.pattern.permute.xlu0 0
    %671 = vperm.xlu0 %670, %v662
    %v672 = vpop.permute.xlu0 %671
    %675 = vset.pattern.permute.xlu0 0
    %676 = vperm.xlu0 %675, %v664
    %v677 = vpop.permute.xlu0 %676
    %680 = vset.pattern.permute.xlu0 0
    %681 = vperm.xlu0 %680, %v666
    %v682 = vpop.permute.xlu0 %681
    %685 = vset.pattern.permute.xlu0 0
    %686 = vperm.xlu0 %685, %v668
    %v687 = vpop.permute.xlu0 %686
    %v689 = vmul.f32 %v672, %v262
    %v690 = vmul.f32 %v677, %v263
    %v691 = vmul.f32 %v682, %v264
    %v692 = vmul.f32 %v687, %v265
    %v693 = vsel %vm165, %v689, 0.0
    %v694 = vrot.slane %v693, 4
    %v695 = vadd.f32 %v693, %v694
    %v696 = vrot.slane %v695, 2
    %v697 = vadd.f32 %v695, %v696
    %v698 = vrot.slane %v697, 1
    %v699 = vadd.f32 %v697, %v698
    %v700 = vsel %vm165, %v690, 0.0
    %v701 = vrot.slane %v700, 4
    %v702 = vadd.f32 %v700, %v701
    %v703 = vrot.slane %v702, 2
    %v704 = vadd.f32 %v702, %v703
    %v705 = vrot.slane %v704, 1
    %v706 = vadd.f32 %v704, %v705
    %v707 = vsel %vm165, %v691, 0.0
    %v708 = vrot.slane %v707, 4
    %v709 = vadd.f32 %v707, %v708
    %v710 = vrot.slane %v709, 2
    %v711 = vadd.f32 %v709, %v710
    %v712 = vrot.slane %v711, 1
    %v713 = vadd.f32 %v711, %v712
    %v714 = vsel %vm165, %v692, 0.0
    %v715 = vrot.slane %v714, 4
    %v716 = vadd.f32 %v714, %v715
    %v717 = vrot.slane %v716, 2
    %v718 = vadd.f32 %v716, %v717
    %v719 = vrot.slane %v718, 1
    %v720 = vadd.f32 %v718, %v719
    %721 = vst [vmem:[#allocation5] sm:$0xf] 0.0
    %v724 = vsel %vm557, %v706, %v699
    %726 = vst.msk [vmem:[#allocation5] sm:$0x3] %vm389, %v724
    %727 = vrot.lane.b32.xlu0 %v473, 32
    %v728 = vpop.permute.xlu0 %727
    %730 = vst.msk [vmem:[#allocation5] sm:$0x3] %vm391, %v728
    %v733 = vsel %vm557, %v720, %v713
    %734 = vrot.lane.b32.xlu0 %v733, 64
    %v735 = vpop.permute.xlu0 %734
    %vm737 = vcmask 779776
    %738 = vst.msk [vmem:[#allocation5 + $0x2] sm:$0x3] %vm737, %v735
    %739 = vrot.lane.b32.xlu0 %v473, 96
    %v740 = vpop.permute.xlu0 %739
    %vm742 = vcmask 1044226
    %743 = vst.msk [vmem:[#allocation5] sm:$0xc] %vm742, %v740
    %v744 = vld [vmem:[#allocation10 + $0x108] sm:$0xff]
    %v745 = vld [vmem:[#allocation10 + $0x110] sm:$0xff]
    %v746 = vld [vmem:[#allocation10 + $0x118] sm:$0xff]
    %v747 = vld [vmem:[#allocation10 + $0x120] sm:$0xff]
    %v748 = vld [vmem:[#allocation10 + $0x128] sm:$0xff]
    %v749 = vld [vmem:[#allocation10 + $0x130] sm:$0xff]
    %v750 = vld [vmem:[#allocation10 + $0x138] sm:$0xff]
    %v751 = vld [vmem:[#allocation10 + $0x140] sm:$0xff]
    %v752 = vld [vmem:[#allocation10 + $0x148] sm:$0xff]
    %v753 = vld [vmem:[#allocation10 + $0x150] sm:$0xff]
    %v754 = vld [vmem:[#allocation10 + $0x158] sm:$0xff]
    %v755 = vld [vmem:[#allocation10 + $0x160] sm:$0xff]
    %v756 = vld [vmem:[#allocation10 + $0x168] sm:$0xff]
    %v757 = vld [vmem:[#allocation10 + $0x170] sm:$0xff]
    %v758 = vld [vmem:[#allocation10 + $0x178] sm:$0xff]
    %v759 = vld [vmem:[#allocation10 + $0x180] sm:$0xff]
    %v760 = vld [vmem:[#allocation5] sm:$0xf]
    %761 = vmatprep.subr.mxu0 0.0
    %762 = vmatpush1.msra.mxu0 %v744
    %763 = vmatprep.subr.mxu0 0.0
    %764 = vmatpush1.msra.mxu0 %v745
    %765 = vmatprep.subr.mxu0 0.0
    %766 = vmatpush1.msra.mxu0 %v746
    %767 = vmatprep.subr.mxu0 0.0
    %768 = vmatpush1.msra.mxu0 %v747
    %769 = vmatprep.subr.mxu0 0.0
    %770 = vmatpush1.msra.mxu0 %v748
    %771 = vmatprep.subr.mxu0 0.0
    %772 = vmatpush1.msra.mxu0 %v749
    %773 = vmatprep.subr.mxu0 0.0
    %774 = vmatpush1.msra.mxu0 %v750
    %775 = vmatprep.subr.mxu0 0.0
    %776 = vmatpush1.msra.mxu0 %v751
    %777 = vmatprep.subr.mxu0 0.0
    %778 = vmatpush1.msra.mxu0 %v752
    %779 = vmatprep.subr.mxu0 0.0
    %780 = vmatpush1.msra.mxu0 %v753
    %781 = vmatprep.subr.mxu0 0.0
    %782 = vmatpush1.msra.mxu0 %v754
    %783 = vmatprep.subr.mxu0 0.0
    %784 = vmatpush1.msra.mxu0 %v755
    %785 = vmatprep.subr.mxu0 0.0
    %786 = vmatpush1.msra.mxu0 %v756
    %787 = vmatprep.subr.mxu0 0.0
    %788 = vmatpush1.msra.mxu0 %v757
    %789 = vmatprep.subr.mxu0 0.0
    %790 = vmatpush1.msra.mxu0 %v758
    %791 = vmatprep.subr.mxu0 0.0
    %792 = vmatpush1.msra.mxu0 %v759
    %793 = vmatprep.subr.mxu0 0.0
    %794 = vmatpush1.msra.mxu0 0.0
    %795 = vmatprep.subr.mxu0 0.0
    %796 = vmatpush1.msra.mxu0 0.0
    %797 = vmatprep.subr.mxu0 0.0
    %798 = vmatpush1.msra.mxu0 0.0
    %799 = vmatprep.subr.mxu0 0.0
    %800 = vmatpush1.msra.mxu0 0.0
    %801 = vmatprep.subr.mxu0 0.0
    %802 = vmatpush1.msra.mxu0 0.0
    %803 = vmatprep.subr.mxu0 0.0
    %804 = vmatpush1.msra.mxu0 0.0
    %805 = vmatprep.subr.mxu0 0.0
    %806 = vmatpush1.msra.mxu0 0.0
    %807 = vmatprep.subr.mxu0 0.0
    %808 = vmatpush1.msra.mxu0 0.0
    %809 = vmatprep.subr.mxu0 0.0
    %810 = vmatpush1.msra.mxu0 0.0
    %811 = vmatprep.subr.mxu0 0.0
    %812 = vmatpush1.msra.mxu0 0.0
    %813 = vmatprep.subr.mxu0 0.0
    %814 = vmatpush1.msra.mxu0 0.0
    %815 = vmatprep.subr.mxu0 0.0
    %816 = vmatpush1.msra.mxu0 0.0
    %817 = vmatprep.subr.mxu0 0.0
    %818 = vmatpush1.msra.mxu0 0.0
    %819 = vmatprep.subr.mxu0 0.0
    %820 = vmatpush1.msra.mxu0 0.0
    %821 = vmatprep.subr.mxu0 0.0
    %822 = vmatpush1.msra.mxu0 0.0
    %823 = vmatprep.subr.mxu0 0.0
    %824 = vmatpush1.msra.mxu0 0.0
    %825 = vmatprep.mubr.f32.mxu0 0.0
    %826 = vmatmul.mubr.f32.gmra.mrb[0].mxu0 %v760
    %v827 = vpop.f32.mrb[0].mxu0
    %v828 = vadd.f32 0.0, %v827
    %v829 = vpop.f32.mrb[0].mxu0
    %830 = vdwg.mxu0
    %831 = vst [vmem:[#allocation6] sm:$0x3] 0.0
    %832 = vst.msk [vmem:[#allocation6] sm:$0x3] %vm389, %v828
    %834 = vrot.lane.b32.xlu0 %v828, 32
    %v835 = vpop.permute.xlu0 %834
    %vm837 = vcmask 519426
    %838 = vst.msk [vmem:[#allocation6 - $0x2] sm:$0xc] %vm837, %v835
    %839 = vrot.lane.b32.xlu0 %v46, 64
    %v840 = vpop.permute.xlu0 %839
    %vm842 = vcmask 550400
    %843 = vst.msk [vmem:[#allocation6] sm:$0x3] %vm842, %v840
    %v844 = vld [vmem:[#allocation10 + $0x188] sm:$0xff]
    %v845 = vld [vmem:[#allocation10 + $0x190] sm:$0xff]
    %v846 = vld [vmem:[#allocation10 + $0x198] sm:$0xff]
    %v847 = vld [vmem:[#allocation10 + $0x1a0] sm:$0xff]
    %v848 = vld [vmem:[#allocation10 + $0x1a8] sm:$0xff]
    %v849 = vld [vmem:[#allocation10 + $0x1b0] sm:$0xff]
    %v850 = vld [vmem:[#allocation10 + $0x1b8] sm:$0xff]
    %v851 = vld [vmem:[#allocation10 + $0x1c0] sm:$0xff]
    %v852 = vld [vmem:[#allocation10 + $0x1c8] sm:$0xff]
    %v853 = vld [vmem:[#allocation10 + $0x1d0] sm:$0xff]
    %v854 = vld [vmem:[#allocation10 + $0x1d8] sm:$0xff]
    %v855 = vld [vmem:[#allocation10 + $0x1e0] sm:$0xff]
    %v856 = vld [vmem:[#allocation10 + $0x1e8] sm:$0xff]
    %v857 = vld [vmem:[#allocation10 + $0x1f0] sm:$0xff]
    %v858 = vld [vmem:[#allocation10 + $0x1f8] sm:$0xff]
    %v859 = vld [vmem:[#allocation10 + $0x200] sm:$0xff]
    %v860 = vld [vmem:[#allocation10 + $0x210] sm:$0x1]
    %v861 = vld [vmem:[#allocation6] sm:$0x3]
    %v862 = vlaneseq
    %v863 = vshrl.u32 %v862, 7
    %v864 = vsub.s32 0, %v863
    %v865 = vrot.slane %v860, %v864
    %866 = vmatprep.subr.mxu0 0.0
    %867 = vmatpush1.msra.mxu0 %v844
    %868 = vmatprep.subr.mxu0 0.0
    %869 = vmatpush1.msra.mxu0 %v845
    %870 = vmatprep.subr.mxu0 0.0
    %871 = vmatpush1.msra.mxu0 %v846
    %872 = vmatprep.subr.mxu0 0.0
    %873 = vmatpush1.msra.mxu0 %v847
    %874 = vmatprep.subr.mxu0 0.0
    %875 = vmatpush1.msra.mxu0 %v848
    %876 = vmatprep.subr.mxu0 0.0
    %877 = vmatpush1.msra.mxu0 %v849
    %878 = vmatprep.subr.mxu0 0.0
    %879 = vmatpush1.msra.mxu0 %v850
    %880 = vmatprep.subr.mxu0 0.0
    %881 = vmatpush1.msra.mxu0 %v851
    %882 = vmatprep.subr.mxu0 0.0
    %883 = vmatpush1.msra.mxu0 %v852
    %884 = vmatprep.subr.mxu0 0.0
    %885 = vmatpush1.msra.mxu0 %v853
    %886 = vmatprep.subr.mxu0 0.0
    %887 = vmatpush1.msra.mxu0 %v854
    %888 = vmatprep.subr.mxu0 0.0
    %889 = vmatpush1.msra.mxu0 %v855
    %890 = vmatprep.subr.mxu0 0.0
    %891 = vmatpush1.msra.mxu0 %v856
    %892 = vmatprep.subr.mxu0 0.0
    %893 = vmatpush1.msra.mxu0 %v857
    %894 = vmatprep.subr.mxu0 0.0
    %895 = vmatpush1.msra.mxu0 %v858
    %896 = vmatprep.subr.mxu0 0.0
    %897 = vmatpush1.msra.mxu0 %v859
    %898 = vmatprep.subr.mxu0 0.0
    %899 = vmatpush1.msra.mxu0 0.0
    %900 = vmatprep.subr.mxu0 0.0
    %901 = vmatpush1.msra.mxu0 0.0
    %902 = vmatprep.subr.mxu0 0.0
    %903 = vmatpush1.msra.mxu0 0.0
    %904 = vmatprep.subr.mxu0 0.0
    %905 = vmatpush1.msra.mxu0 0.0
    %906 = vmatprep.subr.mxu0 0.0
    %907 = vmatpush1.msra.mxu0 0.0
    %908 = vmatprep.subr.mxu0 0.0
    %909 = vmatpush1.msra.mxu0 0.0
    %910 = vmatprep.subr.mxu0 0.0
    %911 = vmatpush1.msra.mxu0 0.0
    %912 = vmatprep.subr.mxu0 0.0
    %913 = vmatpush1.msra.mxu0 0.0
    %914 = vmatprep.subr.mxu0 0.0
    %915 = vmatpush1.msra.mxu0 0.0
    %916 = vmatprep.subr.mxu0 0.0
    %917 = vmatpush1.msra.mxu0 0.0
    %918 = vmatprep.subr.mxu0 0.0
    %919 = vmatpush1.msra.mxu0 0.0
    %920 = vmatprep.subr.mxu0 0.0
    %921 = vmatpush1.msra.mxu0 0.0
    %922 = vmatprep.subr.mxu0 0.0
    %923 = vmatpush1.msra.mxu0 0.0
    %924 = vmatprep.subr.mxu0 0.0
    %925 = vmatpush1.msra.mxu0 0.0
    %926 = vmatprep.subr.mxu0 0.0
    %927 = vmatpush1.msra.mxu0 0.0
    %928 = vmatprep.subr.mxu0 0.0
    %929 = vmatpush1.msra.mxu0 0.0
    %930 = vmatprep.mubr.f32.mxu0 0.0
    %931 = vmatmul.mubr.f32.gmra.mrb[0].mxu0 %v861
    %v932 = vpop.f32.mrb[0].mxu0
    %v933 = vadd.f32 %v865, %v932
    %v934 = vpop.f32.mrb[0].mxu0
    %935 = vdwg.mxu0
    %vm936 = vcmask 58368
    %937 = vst.msk [vmem:[#allocation12] sm:$0x3] %vm936, %v933
    // Predicated region
    $region26: #{multi_modal_attn_forward.1} parent=1 // pred_check
      _
    $region27: #{multi_modal_attn_forward.1} parent=1 // pred_check_branch
      %939 = sbr.rel (0) target = $region29
    $region28: #{multi_modal_attn_forward.1} parent=1 // pred_region
      %s941 = ssub.s32 32, 32
      %942 = vsyncadd [#allocation9], %s941
      %s944 = sshll.u32 [#allocation12], 4
      %s945 = int_to_ptr.vmem [resolvable:$true] %s944
      %947 = dma.vmem_to_hbm [thread:$0]  %s945, 32, %s4, [#allocation9]
    $region29: #{multi_modal_attn_forward.1} parent=1 // pred_fallthru
      _
    // Predicated region
    $region30: #{multi_modal_attn_forward.1} parent=1 // pred_check
      _
    $region31: #{multi_modal_attn_forward.1} parent=1 // pred_check_branch
      %949 = sbr.rel (0) target = $region33
    $region32: #{multi_modal_attn_forward.1} parent=1 // pred_region
      %950 = dma.done [#allocation9], 32
    $region33: #{multi_modal_attn_forward.1} parent=1 // pred_fallthru
      _
    %951 = vsyncpa [#allocation8], 1
    %952 = vsyncpa [#allocation11], 1
    %953 = vsyncpa [#allocation9], 1

</llo_original>
